<compile_context>
chip_gen: v5e
topology: v5e:2x2
jax: 0.10.0
libtpu: 0.0.40
codegen_flags: <defaults>
</compile_context>

<pallas_src>
import functools

import jax
import jax.numpy as jnp
from jax import lax
from jax.experimental import pallas as pl
from jax.experimental.pallas import tpu as pltpu


def _ceil_to(x, m):
    return -(-x // m) * m


def classifier_kernel(obs_ref, theta_ref, w1o_ref, w1t_ref, b1_ref, w2_ref,
                      b2_ref, out_ref):
    # hidden = relu(obs @ W1_obs + theta @ W1_theta' + b1'); theta box
    # normalization is already folded into W1_theta' / b1'.
    acc = jnp.dot(obs_ref[...], w1o_ref[...],
                  preferred_element_type=jnp.float32)          # (TB, HP)
    acc = acc + b1_ref[...]

    d_theta = theta_ref.shape[1]
    if d_theta <= 8:
        # tiny-K contribution as VPU broadcast FMAs instead of a K=2 MXU dot
        theta = theta_ref[...]
        w1t = w1t_ref[...]
        for k in range(d_theta):
            acc = acc + theta[:, k:k + 1] * w1t[k:k + 1, :]
    else:
        acc = acc + jnp.dot(theta_ref[...], w1t_ref[...],
                            preferred_element_type=jnp.float32)

    h = jnp.maximum(acc, 0.0)                                  # (TB, HP) f32

    # lane-dense scalar head: (1, HP) x (TB, HP)^T -> (1, TB); batch in lanes.
    logits = lax.dot_general(w2_ref[...], h,
                             dimension_numbers=(((1,), (1,)), ((), ())),
                             preferred_element_type=jnp.float32)
    prob = jax.nn.sigmoid(logits + b2_ref[0])                  # (1, TB)
    out_ref[0] = prob                                          # block (1,1,TB)


def prepare_params(lower, upper, w1_obs, w1_theta, b1, w2, b2):
    """One-time offline parameter transform:
       * fold (theta - lower)/(upper - lower) into W1_theta / b1
       * zero-pad the hidden dim to a full 128-lane tile
       * keep everything f32 (weights are tiny & VMEM-resident anyway)
    """
    lower = jnp.asarray(lower, jnp.float32).reshape(-1)
    upper = jnp.asarray(upper, jnp.float32).reshape(-1)
    scale = 1.0 / (upper - lower)

    w1_obs = jnp.asarray(w1_obs, jnp.float32)
    w1_theta = jnp.asarray(w1_theta, jnp.float32)
    w1t_folded = w1_theta * scale[:, None]
    b1_folded = jnp.asarray(b1, jnp.float32).reshape(1, -1) - (lower * scale) @ w1_theta

    h = w1_obs.shape[1]
    hp = _ceil_to(h, 128)
    pad = hp - h
    w1o_p = jnp.pad(w1_obs, ((0, 0), (0, pad)))
    w1t_p = jnp.pad(w1t_folded, ((0, 0), (0, pad)))
    b1_p = jnp.pad(b1_folded, ((0, 0), (0, pad)))
    w2_row = jnp.pad(jnp.asarray(w2, jnp.float32).reshape(1, -1), ((0, 0), (0, pad)))
    b2_flat = jnp.asarray(b2, jnp.float32).reshape(-1)
    return (w1o_p, w1t_p, b1_p, w2_row, b2_flat)


def _pick_tile(batch, tb):
    """Lane-aligned batch tile; keep >=2 grid steps when possible (v7x)."""
    tb = max(128, (int(tb) // 128) * 128)
    tb = min(tb, _ceil_to(batch, 128))
    if batch > 128 and -(-batch // tb) < 2:
        tb = _ceil_to(-(-batch // 2), 128)
    return tb


def _block_vmem_bytes(rows, cols, itemsize=4):
    return _ceil_to(rows, 8) * _ceil_to(cols, 128) * itemsize


@functools.partial(jax.jit, static_argnames=("tb",))
def parameterized_classifier_forward(obs, theta, prepped, *, tb=8192):
    """Fused forward: grid over batch tiles, weights resident in VMEM."""
    w1o, w1t, b1, w2_row, b2 = prepped
    B, d_obs = obs.shape
    d_theta = theta.shape[1]
    hp = w1o.shape[1]

    tb_eff = _pick_tile(B, tb)
    grid = -(-B // tb_eff)

    # padded-VMEM budget: double-buffered I/O blocks + h intermediate + weights
    vmem_est = (2 * (_block_vmem_bytes(tb_eff, d_obs)
                     + _block_vmem_bytes(tb_eff, d_theta)
                     + _block_vmem_bytes(1, tb_eff))
                + _block_vmem_bytes(tb_eff, hp)
                + 2 * (_block_vmem_bytes(d_obs, hp) + _block_vmem_bytes(d_theta, hp)
                       + 2 * _block_vmem_bytes(1, hp)))
    vmem_limit = min(max(int(vmem_est * 1.5) + (1 << 20), 32 * 1024 * 1024),
                     100 * 1024 * 1024)

    weight_bytes = 4 * (w1o.size + w1t.size + b1.size + w2_row.size + b2.size)
    cost = pl.CostEstimate(
        flops=2 * grid * tb_eff * hp * (d_obs + d_theta + 1),
        transcendentals=grid * tb_eff,
        bytes_accessed=B * 4 * (d_obs + d_theta + 1) + weight_bytes,
    )

    out = pl.pallas_call(
        classifier_kernel,
        out_shape=jax.ShapeDtypeStruct((grid, 1, tb_eff), jnp.float32),
        grid=(grid,),
        in_specs=[
            pl.BlockSpec((tb_eff, d_obs), lambda i: (i, 0)),       # obs tile
            pl.BlockSpec((tb_eff, d_theta), lambda i: (i, 0)),     # theta tile
            pl.BlockSpec((d_obs, hp), lambda i: (0, 0)),           # resident weights
            pl.BlockSpec((d_theta, hp), lambda i: (0, 0)),
            pl.BlockSpec((1, hp), lambda i: (0, 0)),               # folded bias
            pl.BlockSpec((1, hp), lambda i: (0, 0)),               # head row
            pl.BlockSpec(memory_space=pltpu.MemorySpace.SMEM),     # b2 scalar
        ],
        out_specs=pl.BlockSpec((1, 1, tb_eff), lambda i: (i, 0, 0)),  # lane-dense
        compiler_params=pltpu.CompilerParams(
            dimension_semantics=("parallel",),
            vmem_limit_bytes=vmem_limit),
        cost_estimate=cost,
    )(obs.astype(jnp.float32), theta.astype(jnp.float32),
      w1o, w1t, b1, w2_row, b2)

    # drop the (garbage) padded tail rows of the last partial tile
    return out.reshape(-1)[:B].reshape(B, 1)


if __name__ == "__main__":
    B, D_OBS, D_THETA, H = 256, 16, 2, 32

    key = jax.random.PRNGKey(0)
    k = jax.random.split(key, 5)

    # deterministic example inputs
    observations = jax.random.normal(k[0], (B, D_OBS), jnp.float32)
    thetas = jax.random.uniform(k[1], (B, D_THETA), jnp.float32, -3.0, 3.0)

    # __init__(lower, upper): stored as flat float tensors
    lower = jnp.array([-3.0, -3.0], jnp.float32)
    upper = jnp.array([3.0, 3.0], jnp.float32)

    # deterministic synthetic parameters: Linear(D_theta + D_obs -> H -> 1)
    w1_obs = 0.1 * jax.random.normal(k[2], (D_OBS, H), jnp.float32)
    w1_theta = 0.1 * jax.random.normal(k[3], (D_THETA, H), jnp.float32)
    b1 = jnp.zeros((1, H), jnp.float32)
    w2 = 0.1 * jax.random.normal(k[4], (H, 1), jnp.float32)
    b2 = jnp.zeros((1, 1), jnp.float32)

    prepped = prepare_params(lower, upper, w1_obs, w1_theta, b1, w2, b2)

    # tb is clamped internally; at B=256 this runs 2 grid steps of 128 rows.
    out = parameterized_classifier_forward(observations, thetas, prepped, tb=8192)
    out = jax.block_until_ready(out)

    # plain-JAX f32 reference of the original (unfolded) forward
    theta_n = (thetas - lower[None, :]) / (upper[None, :] - lower[None, :])
    h_ref = jnp.maximum(theta_n @ w1_theta + observations @ w1_obs + b1, 0.0)
    ref = jax.nn.sigmoid(h_ref @ w2 + b2)

    assert out.shape == (B, 1)
    err = jnp.max(jnp.abs(out - ref))
    assert jnp.allclose(out, ref, atol=1e-4), f"mismatch vs reference, max err {err}"

    print("KERNEL_OK")
</pallas_src>

<mosaic_0001>
module attributes {stable_mosaic.version = 11 : i64} {
  func.func @classifier_kernel(%arg0: i32, %arg1: memref<128x16xf32, #tpu.memory_space<vmem>>, %arg2: memref<128x2xf32, #tpu.memory_space<vmem>>, %arg3: memref<16x128xf32, #tpu.memory_space<vmem>>, %arg4: memref<2x128xf32, #tpu.memory_space<vmem>>, %arg5: memref<1x128xf32, #tpu.memory_space<vmem>>, %arg6: memref<1x128xf32, #tpu.memory_space<vmem>>, %arg7: memref<1xf32, #tpu.memory_space<smem>>, %arg8: memref<1x1x128xf32, #tpu.memory_space<vmem>>) attributes {dimension_semantics = [#tpu.dimension_semantics<parallel>], iteration_bounds = array<i64: 2>, scalar_prefetch = 0 : i64, scratch_operands = 0 : i64, tpu.core_type = #tpu.core_type<tc>, window_params = [{transform_indices = @transform_0, window_bounds = array<i64: 128, 16>}, {transform_indices = @transform_1, window_bounds = array<i64: 128, 2>}, {pipeline_mode = #tpu.pipeline_mode<synchronous>, transform_indices = @transform_2, window_bounds = array<i64: 16, 128>}, {pipeline_mode = #tpu.pipeline_mode<synchronous>, transform_indices = @transform_3, window_bounds = array<i64: 2, 128>}, {pipeline_mode = #tpu.pipeline_mode<synchronous>, transform_indices = @transform_4, window_bounds = array<i64: 1, 128>}, {pipeline_mode = #tpu.pipeline_mode<synchronous>, transform_indices = @transform_5, window_bounds = array<i64: 1, 128>}, {transform_indices = @transform_6, window_bounds = array<i64: 1>}, {transform_indices = @transform_7, window_bounds = array<i64: 1, 1, 128>}]} {
    %c0 = arith.constant 0 : index
    %c0_0 = arith.constant 0 : index
    %0 = vector.load %arg1[%c0, %c0_0] : memref<128x16xf32, #tpu.memory_space<vmem>>, vector<128x16xf32>
    %c0_1 = arith.constant 0 : index
    %c0_2 = arith.constant 0 : index
    %1 = vector.load %arg3[%c0_1, %c0_2] : memref<16x128xf32, #tpu.memory_space<vmem>>, vector<16x128xf32>
    %cst = arith.constant dense<0.000000e+00> : vector<128x128xf32>
    %2 = tpu.matmul %0, %1, %cst {dimension_numbers = #tpu.dot_dimension_numbers<[1], [0], [0], [1], [0, 0, 1, 1], [], []>} : vector<128x16xf32>, vector<16x128xf32>, vector<128x128xf32> -> vector<128x128xf32>
    %c0_3 = arith.constant 0 : index
    %c0_4 = arith.constant 0 : index
    %3 = vector.load %arg5[%c0_3, %c0_4] : memref<1x128xf32, #tpu.memory_space<vmem>>, vector<1x128xf32>
    %4 = vector.broadcast %3 : vector<1x128xf32> to vector<128x128xf32>
    %5 = arith.addf %2, %4 : vector<128x128xf32>
    %c0_5 = arith.constant 0 : index
    %c0_6 = arith.constant 0 : index
    %6 = vector.load %arg2[%c0_5, %c0_6] : memref<128x2xf32, #tpu.memory_space<vmem>>, vector<128x2xf32>
    %c0_7 = arith.constant 0 : index
    %c0_8 = arith.constant 0 : index
    %7 = vector.load %arg4[%c0_7, %c0_8] : memref<2x128xf32, #tpu.memory_space<vmem>>, vector<2x128xf32>
    %8 = vector.extract_strided_slice %6 {offsets = [0, 0], sizes = [128, 1], strides = [1, 1]} : vector<128x2xf32> to vector<128x1xf32>
    %9 = vector.extract_strided_slice %7 {offsets = [0, 0], sizes = [1, 128], strides = [1, 1]} : vector<2x128xf32> to vector<1x128xf32>
    %10 = vector.broadcast %8 : vector<128x1xf32> to vector<128x128xf32>
    %11 = vector.broadcast %9 : vector<1x128xf32> to vector<128x128xf32>
    %12 = arith.mulf %10, %11 : vector<128x128xf32>
    %13 = arith.addf %5, %12 : vector<128x128xf32>
    %14 = vector.extract_strided_slice %6 {offsets = [0, 1], sizes = [128, 1], strides = [1, 1]} : vector<128x2xf32> to vector<128x1xf32>
    %15 = vector.extract_strided_slice %7 {offsets = [1, 0], sizes = [1, 128], strides = [1, 1]} : vector<2x128xf32> to vector<1x128xf32>
    %16 = vector.broadcast %14 : vector<128x1xf32> to vector<128x128xf32>
    %17 = vector.broadcast %15 : vector<1x128xf32> to vector<128x128xf32>
    %18 = arith.mulf %16, %17 : vector<128x128xf32>
    %19 = arith.addf %13, %18 : vector<128x128xf32>
    %cst_9 = arith.constant 0.000000e+00 : f32
    %20 = vector.broadcast %cst_9 : f32 to vector<128x128xf32>
    %21 = arith.maximumf %19, %20 : vector<128x128xf32>
    %c0_10 = arith.constant 0 : index
    %c0_11 = arith.constant 0 : index
    %22 = vector.load %arg6[%c0_10, %c0_11] : memref<1x128xf32, #tpu.memory_space<vmem>>, vector<1x128xf32>
    %cst_12 = arith.constant dense<0.000000e+00> : vector<1x128xf32>
    %23 = tpu.matmul %22, %21, %cst_12 {dimension_numbers = #tpu.dot_dimension_numbers<[1], [1], [0], [0], [0, 0, 1, 0], [], []>} : vector<1x128xf32>, vector<128x128xf32>, vector<1x128xf32> -> vector<1x128xf32>
    %c0_13 = arith.constant 0 : index
    %24 = memref.load %arg7[%c0_13] : memref<1xf32, #tpu.memory_space<smem>>
    %25 = vector.broadcast %24 : f32 to vector<1x128xf32>
    %26 = arith.addf %23, %25 : vector<1x128xf32>
    %27 = arith.negf %26 : vector<1x128xf32>
    %28 = math.exp %27 : vector<1x128xf32>
    %cst_14 = arith.constant 1.000000e+00 : f32
    %29 = vector.broadcast %cst_14 : f32 to vector<1x128xf32>
    %30 = arith.addf %29, %28 : vector<1x128xf32>
    %31 = arith.divf %29, %30 : vector<1x128xf32>
    %c0_15 = arith.constant 0 : index
    %c0_16 = arith.constant 0 : index
    %c0_17 = arith.constant 0 : index
    %32 = vector.load %arg8[%c0_15, %c0_16, %c0_17] : memref<1x1x128xf32, #tpu.memory_space<vmem>>, vector<1x1x128xf32>
    %33 = vector.shape_cast %32 : vector<1x1x128xf32> to vector<1x128xf32>
    %34 = vector.shape_cast %31 : vector<1x128xf32> to vector<1x1x128xf32>
    tpu.vector_store %arg8[%c0_15, %c0_16, %c0_17], %34 {strides = array<i32>} : memref<1x1x128xf32, #tpu.memory_space<vmem>>, vector<1x1x128xf32>,
    return
  }
  func.func @transform_0(%arg0: i32) -> (i32, i32) {
    %c0_i32 = arith.constant 0 : i32
    %c0_i32_0 = arith.constant 0 : i32
    return %arg0, %c0_i32 : i32, i32
  }
  func.func @transform_1(%arg0: i32) -> (i32, i32) {
    %c0_i32 = arith.constant 0 : i32
    %c0_i32_0 = arith.constant 0 : i32
    return %arg0, %c0_i32 : i32, i32
  }
  func.func @transform_2(%arg0: i32) -> (i32, i32) {
    %c0_i32 = arith.constant 0 : i32
    %c0_i32_0 = arith.constant 0 : i32
    %c0_i32_1 = arith.constant 0 : i32
    return %c0_i32, %c0_i32_0 : i32, i32
  }
  func.func @transform_3(%arg0: i32) -> (i32, i32) {
    %c0_i32 = arith.constant 0 : i32
    %c0_i32_0 = arith.constant 0 : i32
    %c0_i32_1 = arith.constant 0 : i32
    return %c0_i32, %c0_i32_0 : i32, i32
  }
  func.func @transform_4(%arg0: i32) -> (i32, i32) {
    %c0_i32 = arith.constant 0 : i32
    %c0_i32_0 = arith.constant 0 : i32
    %c0_i32_1 = arith.constant 0 : i32
    return %c0_i32, %c0_i32_0 : i32, i32
  }
  func.func @transform_5(%arg0: i32) -> (i32, i32) {
    %c0_i32 = arith.constant 0 : i32
    %c0_i32_0 = arith.constant 0 : i32
    %c0_i32_1 = arith.constant 0 : i32
    return %c0_i32, %c0_i32_0 : i32, i32
  }
  func.func @transform_6(%arg0: i32) -> i32 {
    %c0_i32 = arith.constant 0 : i32
    %c0_i32_0 = arith.constant 0 : i32
    return %c0_i32 : i32
  }
  func.func @transform_7(%arg0: i32) -> (i32, i32, i32) {
    %c0_i32 = arith.constant 0 : i32
    %c0_i32_0 = arith.constant 0 : i32
    %c0_i32_1 = arith.constant 0 : i32
    return %arg0, %c0_i32, %c0_i32_0 : i32, i32, i32
  }
}

</mosaic_0001>

<llo_original>
// kernel: parameterized_classifier_forward.1
$region0: #{parameterized_classifier_forward.1}
  #allocation0 [shape = 'u32[]', space=smem, size = 0x4, offset = 0x4, fixed_abs, tag = 'smem constant byte address 0x4 - core index']
  #allocation1 [shape = 'u32[72,128]{1,0:T(1,128)}', space=vmem, size = 0x9000, scoped, tag = 'internal scratch']
  #allocation2 [shape = 'f32[1]{0:T(128)S(6)}', space=smem, size = 0x200, scoped, tag = 'scoped memory for parameterized_classifier_forward.1']
  %s0 = inlined_call_operand.vmem [shape: f32[256,16], index: 0, kind: input, shape index: {}]
  %s1 = inlined_call_operand.vmem [shape: f32[256,2], index: 1, kind: input, shape index: {}]
  %s2 = inlined_call_operand.vmem [shape: f32[16,128], index: 2, kind: input, shape index: {}]
  %s3 = inlined_call_operand.vmem [shape: f32[2,128], index: 3, kind: input, shape index: {}]
  %s4 = inlined_call_operand.vmem [shape: f32[1,128], index: 4, kind: input, shape index: {}]
  %s5 = inlined_call_operand.vmem [shape: f32[1,128], index: 5, kind: input, shape index: {}]
  %s6 = inlined_call_operand.<no memory space> [shape: f32[1], index: 6, kind: input, shape index: {}]
  %s7 = inlined_call_operand.hbm [shape: f32[2,1,128], index: 7, kind: output, shape index: {}]
  %s8 = sld [smem:[#allocation0]]
  $region61: #{parameterized_classifier_forward.1} parent=0
    _
  %s10 = ssub.s32 1, %s8
  %s11 = scalar_select 0, %s10, %s8
  %12 = sst [smem:[#allocation2]] %s6
  $region1: #{parameterized_classifier_forward.1} parent=0
    #allocation3 [shape = 'u8[1024]{0}', space=vmem, size = 0x400, scoped, tag = 'output window, operand 0']
    #allocation4 [shape = 's32[2]{0}', space=sflag, size = 0x8, scoped, tag = 'scoped memory for parameterized_classifier_forward.1']
    %13 = vsyncpa [#allocation4], 0
    %s14 = scalar_lea.sflag [#allocation4], 1
    %15 = vsyncpa %s14, 0
    loop: start=0, step=1, limit=4
    $region2: #{parameterized_classifier_forward.1} parent=1 // loop_pre_header
      _
    $region3: #{parameterized_classifier_forward.1} parent=1 // loop_header
      %s17 = sphi 0, %s21
      %p18 = scmp.ge.s32.totalorder %s17, 4
      %s27 = sphi 0, %s29
      %s30 = sphi 0, %s27
      %s31 = sphi 0, %s30
      %s47 = sphi 0, %s31
      %s53 = sphi 0, %s55
      %s56 = sphi 0, %s53
      %s57 = sphi 0, %s56
      %s73 = sphi 0, %s57
      %s77 = sphi 0, %s77
      %s79 = sphi 0, %s77
      %s80 = sphi 0, %s79
      %s94 = sphi 0, %s80
      %s98 = sphi 0, %s98
      %s100 = sphi 0, %s98
      %s101 = sphi 0, %s100
      %s115 = sphi 0, %s101
      %s119 = sphi 0, %s119
      %s121 = sphi 0, %s119
      %s122 = sphi 0, %s121
      %s136 = sphi 0, %s122
      %s140 = sphi 0, %s140
      %s142 = sphi 0, %s140
      %s143 = sphi 0, %s142
      %s157 = sphi 0, %s143
      %s161 = sphi 0, %s161
      %s163 = sphi 0, %s161
      %s164 = sphi 0, %s163
      %s178 = sphi 0, %s164
      %s184 = sphi 0, %s186
      %s187 = sphi 0, %s184
      %s188 = sphi 0, %s187
      %s204 = sphi 0, %s188
    $region4: #{parameterized_classifier_forward.1} parent=1 // loop_header_branch
      %20 = sbr.rel (%p18) target = $region8
    $region5: #{parameterized_classifier_forward.1} parent=1 // loop_body
      %s22 = ssub.s32 %s17, 1
      %s23 = ssub.s32 %s17, 2
      %s24 = sadd.s32 %s17, 1
      %s25 = ssub.s32 %s17, %s24
      %p26 = scmp.eq.s32.totalorder %s25, 0
      %s28 = sadd.s32 %s27, 1
      %s29 = scalar_select %p26, %s27, %s28
      %p32 = pneg %p26
      %p33 = scmp.eq.s32.totalorder %s17, 1
      %p34 = por %p32, %p33
      %p35 = scmp.ne.s32.totalorder %s27, %s30
      %p36 = scmp.eq.s32.totalorder %s17, 0
      %p37 = por %p35, %p36
      %p38 = scmp.ne.s32.totalorder %s27, %s30
      %p39 = scmp.eq.s32.totalorder %s22, 1
      %p40 = por %p38, %p39
      %p41 = scmp.ne.s32.totalorder %s30, %s31
      %p42 = scmp.eq.s32.totalorder %s22, 0
      %p43 = por %p41, %p42
      %p44 = scmp.ne.s32.totalorder %s30, %s31
      %p45 = scmp.eq.s32.totalorder %s23, 1
      %p46 = por %p44, %p45
      %p48 = scmp.ne.s32.totalorder %s31, %s47
      %p49 = scmp.eq.s32.totalorder %s23, 0
      %p50 = por %p48, %p49
      %s51 = ssub.s32 %s17, %s24
      %p52 = scmp.eq.s32.totalorder %s51, 0
      %s54 = sadd.s32 %s53, 1
      %s55 = scalar_select %p52, %s53, %s54
      %p58 = pneg %p52
      %p59 = scmp.eq.s32.totalorder %s17, 1
      %p60 = por %p58, %p59
      %p61 = scmp.ne.s32.totalorder %s53, %s56
      %p62 = scmp.eq.s32.totalorder %s17, 0
      %p63 = por %p61, %p62
      %p64 = scmp.ne.s32.totalorder %s53, %s56
      %p65 = scmp.eq.s32.totalorder %s22, 1
      %p66 = por %p64, %p65
      %p67 = scmp.ne.s32.totalorder %s56, %s57
      %p68 = scmp.eq.s32.totalorder %s22, 0
      %p69 = por %p67, %p68
      %p70 = scmp.ne.s32.totalorder %s56, %s57
      %p71 = scmp.eq.s32.totalorder %s23, 1
      %p72 = por %p70, %p71
      %p74 = scmp.ne.s32.totalorder %s57, %s73
      %p75 = scmp.eq.s32.totalorder %s23, 0
      %p76 = por %p74, %p75
      %s78 = sadd.s32 %s77, 1
      %p81 = scmp.eq.s32.totalorder %s17, 1
      %p82 = scmp.ne.s32.totalorder %s77, %s79
      %p83 = scmp.eq.s32.totalorder %s17, 0
      %p84 = por %p82, %p83
      %p85 = scmp.ne.s32.totalorder %s77, %s79
      %p86 = scmp.eq.s32.totalorder %s22, 1
      %p87 = por %p85, %p86
      %p88 = scmp.ne.s32.totalorder %s79, %s80
      %p89 = scmp.eq.s32.totalorder %s22, 0
      %p90 = por %p88, %p89
      %p91 = scmp.ne.s32.totalorder %s79, %s80
      %p92 = scmp.eq.s32.totalorder %s23, 1
      %p93 = por %p91, %p92
      %p95 = scmp.ne.s32.totalorder %s80, %s94
      %p96 = scmp.eq.s32.totalorder %s23, 0
      %p97 = por %p95, %p96
      %s99 = sadd.s32 %s98, 1
      %p102 = scmp.eq.s32.totalorder %s17, 1
      %p103 = scmp.ne.s32.totalorder %s98, %s100
      %p104 = scmp.eq.s32.totalorder %s17, 0
      %p105 = por %p103, %p104
      %p106 = scmp.ne.s32.totalorder %s98, %s100
      %p107 = scmp.eq.s32.totalorder %s22, 1
      %p108 = por %p106, %p107
      %p109 = scmp.ne.s32.totalorder %s100, %s101
      %p110 = scmp.eq.s32.totalorder %s22, 0
      %p111 = por %p109, %p110
      %p112 = scmp.ne.s32.totalorder %s100, %s101
      %p113 = scmp.eq.s32.totalorder %s23, 1
      %p114 = por %p112, %p113
      %p116 = scmp.ne.s32.totalorder %s101, %s115
      %p117 = scmp.eq.s32.totalorder %s23, 0
      %p118 = por %p116, %p117
      %s120 = sadd.s32 %s119, 1
      %p123 = scmp.eq.s32.totalorder %s17, 1
      %p124 = scmp.ne.s32.totalorder %s119, %s121
      %p125 = scmp.eq.s32.totalorder %s17, 0
      %p126 = por %p124, %p125
      %p127 = scmp.ne.s32.totalorder %s119, %s121
      %p128 = scmp.eq.s32.totalorder %s22, 1
      %p129 = por %p127, %p128
      %p130 = scmp.ne.s32.totalorder %s121, %s122
      %p131 = scmp.eq.s32.totalorder %s22, 0
      %p132 = por %p130, %p131
      %p133 = scmp.ne.s32.totalorder %s121, %s122
      %p134 = scmp.eq.s32.totalorder %s23, 1
      %p135 = por %p133, %p134
      %p137 = scmp.ne.s32.totalorder %s122, %s136
      %p138 = scmp.eq.s32.totalorder %s23, 0
      %p139 = por %p137, %p138
      %s141 = sadd.s32 %s140, 1
      %p144 = scmp.eq.s32.totalorder %s17, 1
      %p145 = scmp.ne.s32.totalorder %s140, %s142
      %p146 = scmp.eq.s32.totalorder %s17, 0
      %p147 = por %p145, %p146
      %p148 = scmp.ne.s32.totalorder %s140, %s142
      %p149 = scmp.eq.s32.totalorder %s22, 1
      %p150 = por %p148, %p149
      %p151 = scmp.ne.s32.totalorder %s142, %s143
      %p152 = scmp.eq.s32.totalorder %s22, 0
      %p153 = por %p151, %p152
      %p154 = scmp.ne.s32.totalorder %s142, %s143
      %p155 = scmp.eq.s32.totalorder %s23, 1
      %p156 = por %p154, %p155
      %p158 = scmp.ne.s32.totalorder %s143, %s157
      %p159 = scmp.eq.s32.totalorder %s23, 0
      %p160 = por %p158, %p159
      %s162 = sadd.s32 %s161, 1
      %p165 = scmp.eq.s32.totalorder %s17, 1
      %p166 = scmp.ne.s32.totalorder %s161, %s163
      %p167 = scmp.eq.s32.totalorder %s17, 0
      %p168 = por %p166, %p167
      %p169 = scmp.ne.s32.totalorder %s161, %s163
      %p170 = scmp.eq.s32.totalorder %s22, 1
      %p171 = por %p169, %p170
      %p172 = scmp.ne.s32.totalorder %s163, %s164
      %p173 = scmp.eq.s32.totalorder %s22, 0
      %p174 = por %p172, %p173
      %p175 = scmp.ne.s32.totalorder %s163, %s164
      %p176 = scmp.eq.s32.totalorder %s23, 1
      %p177 = por %p175, %p176
      %p179 = scmp.ne.s32.totalorder %s164, %s178
      %p180 = scmp.eq.s32.totalorder %s23, 0
      %p181 = por %p179, %p180
      %s182 = ssub.s32 %s17, %s24
      %p183 = scmp.eq.s32.totalorder %s182, 0
      %s185 = sadd.s32 %s184, 1
      %s186 = scalar_select %p183, %s184, %s185
      %p189 = pneg %p183
      %p190 = scmp.eq.s32.totalorder %s17, 1
      %p191 = por %p189, %p190
      %p192 = scmp.ne.s32.totalorder %s184, %s187
      %p193 = scmp.eq.s32.totalorder %s17, 0
      %p194 = por %p192, %p193
      %p195 = scmp.ne.s32.totalorder %s184, %s187
      %p196 = scmp.eq.s32.totalorder %s22, 1
      %p197 = por %p195, %p196
      %p198 = scmp.ne.s32.totalorder %s187, %s188
      %p199 = scmp.eq.s32.totalorder %s22, 0
      %p200 = por %p198, %p199
      %p201 = scmp.ne.s32.totalorder %s187, %s188
      %p202 = scmp.eq.s32.totalorder %s23, 1
      %p203 = por %p201, %p202
      %p205 = scmp.ne.s32.totalorder %s188, %s204
      %p206 = scmp.eq.s32.totalorder %s23, 0
      %p207 = por %p205, %p206
      %p208 = scmp.le.s32.totalorder 1, %s17
      %p209 = scmp.lt.s32.totalorder %s17, 3
      %p210 = pnand %p208, %p209
      %p211 = pneg %p210
      // Predicated region
      $region9: #{parameterized_classifier_forward.1} parent=5 // pred_check
        _
      $region10: #{parameterized_classifier_forward.1} parent=5 // pred_check_branch
        %213 = sbr.rel (%p210) target = $region12
      $region11: #{parameterized_classifier_forward.1} parent=5 // pred_region
        %s214 = ssub.s32 %s17, 1
        // Predicated region
        $region13: #{parameterized_classifier_forward.1} parent=11 // pred_check
          %p215 = pneg %p90
        $region14: #{parameterized_classifier_forward.1} parent=11 // pred_check_branch
          %217 = sbr.rel (%p215) target = $region16
        $region15: #{parameterized_classifier_forward.1} parent=11 // pred_region
          _
        $region16: #{parameterized_classifier_forward.1} parent=11 // pred_fallthru
          _
        // Predicated region
        $region17: #{parameterized_classifier_forward.1} parent=11 // pred_check
          %p218 = pneg %p111
        $region18: #{parameterized_classifier_forward.1} parent=11 // pred_check_branch
          %220 = sbr.rel (%p218) target = $region20
        $region19: #{parameterized_classifier_forward.1} parent=11 // pred_region
          _
        $region20: #{parameterized_classifier_forward.1} parent=11 // pred_fallthru
          _
        // Predicated region
        $region21: #{parameterized_classifier_forward.1} parent=11 // pred_check
          %p221 = pneg %p132
        $region22: #{parameterized_classifier_forward.1} parent=11 // pred_check_branch
          %223 = sbr.rel (%p221) target = $region24
        $region23: #{parameterized_classifier_forward.1} parent=11 // pred_region
          _
        $region24: #{parameterized_classifier_forward.1} parent=11 // pred_fallthru
          _
        // Predicated region
        $region25: #{parameterized_classifier_forward.1} parent=11 // pred_check
          %p224 = pneg %p153
        $region26: #{parameterized_classifier_forward.1} parent=11 // pred_check_branch
          %226 = sbr.rel (%p224) target = $region28
        $region27: #{parameterized_classifier_forward.1} parent=11 // pred_region
          _
        $region28: #{parameterized_classifier_forward.1} parent=11 // pred_fallthru
          _
        // Predicated region
        $region29: #{parameterized_classifier_forward.1} parent=11 // pred_check
          %p227 = pneg %p174
        $region30: #{parameterized_classifier_forward.1} parent=11 // pred_check_branch
          %229 = sbr.rel (%p227) target = $region32
        $region31: #{parameterized_classifier_forward.1} parent=11 // pred_region
          _
        $region32: #{parameterized_classifier_forward.1} parent=11 // pred_fallthru
          _
      $region12: #{parameterized_classifier_forward.1} parent=5 // pred_fallthru
        _
      %p230 = scmp.lt.s32.totalorder %s17, 2
      // Predicated region
      $region33: #{parameterized_classifier_forward.1} parent=5 // pred_check
        %p231 = pneg %p230
      $region34: #{parameterized_classifier_forward.1} parent=5 // pred_check_branch
        %233 = sbr.rel (%p231) target = $region36
      $region35: #{parameterized_classifier_forward.1} parent=5 // pred_region
        // Predicated region
        $region37: #{parameterized_classifier_forward.1} parent=35 // pred_check
          %p234 = pneg %p37
        $region38: #{parameterized_classifier_forward.1} parent=35 // pred_check_branch
          %236 = sbr.rel (%p234) target = $region40
        $region39: #{parameterized_classifier_forward.1} parent=35 // pred_region
          %s237 = smul.u32 16, %s17
          %p238 = scmp.lt.s32.totalorder %s237, 31
          %s239 = scalar_select %p238, %s237, 31
          %s240 = smul.addr %s239, 8
          %s241 = scalar_lea.vmem %s0, %s240
          %s242 = smul.u32 16, %s17
        $region40: #{parameterized_classifier_forward.1} parent=35 // pred_fallthru
          _
        // Predicated region
        $region41: #{parameterized_classifier_forward.1} parent=35 // pred_check
          %p243 = pneg %p63
        $region42: #{parameterized_classifier_forward.1} parent=35 // pred_check_branch
          %245 = sbr.rel (%p243) target = $region44
        $region43: #{parameterized_classifier_forward.1} parent=35 // pred_region
          %s246 = smul.u32 16, %s17
          %p247 = scmp.lt.s32.totalorder %s246, 31
          %s248 = scalar_select %p247, %s246, 31
          %s249 = smul.addr %s248, 8
          %s250 = scalar_lea.vmem %s1, %s249
          %s251 = smul.u32 16, %s17
        $region44: #{parameterized_classifier_forward.1} parent=35 // pred_fallthru
          _
      $region36: #{parameterized_classifier_forward.1} parent=5 // pred_fallthru
        _
      %p252 = scmp.le.s32.totalorder 1, %s17
      %p253 = scmp.lt.s32.totalorder %s17, 3
      %p254 = pnand %p252, %p253
      %p255 = pneg %p254
      // Predicated region
      $region45: #{parameterized_classifier_forward.1} parent=5 // pred_check
        _
      $region46: #{parameterized_classifier_forward.1} parent=5 // pred_check_branch
        %257 = sbr.rel (%p254) target = $region48
      $region47: #{parameterized_classifier_forward.1} parent=5 // pred_region
        %s258 = ssub.s32 %s17, 1
        %s259 = smul.u32 16, %s22
        %p260 = scmp.lt.s32.totalorder %s259, 31
        %s261 = scalar_select %p260, %s259, 31
        %s262 = smul.addr %s261, 8
        %s263 = scalar_lea.vmem %s0, %s262
        %p264 = pneg %p43
        %p265 = pneg %p40
        %s266 = smul.u32 16, %s22
        %p267 = scmp.lt.s32.totalorder %s266, 31
        %s268 = scalar_select %p267, %s266, 31
        %s269 = smul.addr %s268, 8
        %s270 = scalar_lea.vmem %s1, %s269
        %p271 = pneg %p69
        %p272 = pneg %p66
        %p273 = pneg %p90
        %p274 = pneg %p87
        %p275 = pneg %p111
        %p276 = pneg %p108
        %p277 = pneg %p132
        %p278 = pneg %p129
        %p279 = pneg %p153
        %p280 = pneg %p150
        %p281 = pneg %p174
        %p282 = pneg %p171
        %p283 = pneg %p200
        %p284 = pneg %p197
        %s285 = sand.u32 %s187, 1
        %s286 = scalar_lea.sflag [#allocation4], %s285
        %s287 = sand.u32 %s187, 1
        %s288 = scalar_lea.vmem [#allocation3], %s287
        %s289 = smul.u32 16, %s22
        %p290 = scmp.lt.s32.totalorder %s289, 31
        %s291 = scalar_select %p290, %s289, 31
        %s292 = smul.addr %s291, 8
        %s293 = scalar_lea.vmem %s0, %s292
        %s294 = smul.u32 16, %s22
        %s295 = smul.u32 16, %s22
        %p296 = scmp.lt.s32.totalorder %s295, 31
        %s297 = scalar_select %p296, %s295, 31
        %s298 = smul.addr %s297, 8
        %s299 = scalar_lea.vmem %s1, %s298
        %s300 = smul.u32 16, %s22
        %v301 = vld [vmem:[%s293] sm:$0xff]
        %v302 = vld [vmem:[%s293 + $0x8] sm:$0xff]
        %v303 = vld [vmem:[%s293 + $0x10] sm:$0xff]
        %v304 = vld [vmem:[%s293 + $0x18] sm:$0xff]
        %v305 = vld [vmem:[%s293 + $0x20] sm:$0xff]
        %v306 = vld [vmem:[%s293 + $0x28] sm:$0xff]
        %v307 = vld [vmem:[%s293 + $0x30] sm:$0xff]
        %v308 = vld [vmem:[%s293 + $0x38] sm:$0xff]
        %v309 = vld [vmem:[%s293 + $0x40] sm:$0xff]
        %v310 = vld [vmem:[%s293 + $0x48] sm:$0xff]
        %v311 = vld [vmem:[%s293 + $0x50] sm:$0xff]
        %v312 = vld [vmem:[%s293 + $0x58] sm:$0xff]
        %v313 = vld [vmem:[%s293 + $0x60] sm:$0xff]
        %v314 = vld [vmem:[%s293 + $0x68] sm:$0xff]
        %v315 = vld [vmem:[%s293 + $0x70] sm:$0xff]
        %v316 = vld [vmem:[%s293 + $0x78] sm:$0xff]
        %v317 = vld [vmem:[%s2] sm:$0xff]
        %v318 = vld [vmem:[%s2 + $0x8] sm:$0xff]
        %v319 = vld [vmem:[%s4] sm:$0x1]
        %v321 = vperm.slane %v319, 0
        %vm323 = vcmask 130048
        %v325 = vsel %vm323, %v301, 0
        %v328 = vsel %vm323, %v302, 0
        %v331 = vsel %vm323, %v303, 0
        %v334 = vsel %vm323, %v304, 0
        %v337 = vsel %vm323, %v305, 0
        %v340 = vsel %vm323, %v306, 0
        %v343 = vsel %vm323, %v307, 0
        %v346 = vsel %vm323, %v308, 0
        %v349 = vsel %vm323, %v309, 0
        %v352 = vsel %vm323, %v310, 0
        %v355 = vsel %vm323, %v311, 0
        %v358 = vsel %vm323, %v312, 0
        %v361 = vsel %vm323, %v313, 0
        %v364 = vsel %vm323, %v314, 0
        %v367 = vsel %vm323, %v315, 0
        %v370 = vsel %vm323, %v316, 0
        %372 = vmatpush.msra.mxu0 0.0
        %373 = vmatpush.msra.mxu0 0.0
        %374 = vmatpush.msra.mxu0 0.0
        %375 = vmatpush.msra.mxu0 0.0
        %376 = vmatpush.msra.mxu0 0.0
        %377 = vmatpush.msra.mxu0 0.0
        %378 = vmatpush.msra.mxu0 0.0
        %379 = vmatpush.msra.mxu0 0.0
        %380 = vmatpush.msra.mxu0 0.0
        %381 = vmatpush.msra.mxu0 0.0
        %382 = vmatpush.msra.mxu0 0.0
        %383 = vmatpush.msra.mxu0 0.0
        %384 = vmatpush.msra.mxu0 0.0
        %385 = vmatpush.msra.mxu0 0.0
        %386 = vmatpush.msra.mxu0 %v318
        %387 = vmatpush.msra.mxu0 %v317
        %388 = vmatmul.f32.gmra.mxu0 %v325
        %v389 = vpop.f32.mrf.mxu0
        %v390 = vadd.f32 %v321, %v389
        %391 = vmatmul.f32.gmra.mxu0 %v328
        %v392 = vpop.f32.mrf.mxu0
        %v393 = vadd.f32 %v321, %v392
        %394 = vmatmul.f32.gmra.mxu0 %v331
        %v395 = vpop.f32.mrf.mxu0
        %v396 = vadd.f32 %v321, %v395
        %397 = vmatmul.f32.gmra.mxu0 %v334
        %v398 = vpop.f32.mrf.mxu0
        %v399 = vadd.f32 %v321, %v398
        %400 = vmatmul.f32.gmra.mxu0 %v337
        %v401 = vpop.f32.mrf.mxu0
        %v402 = vadd.f32 %v321, %v401
        %403 = vmatmul.f32.gmra.mxu0 %v340
        %v404 = vpop.f32.mrf.mxu0
        %v405 = vadd.f32 %v321, %v404
        %406 = vmatmul.f32.gmra.mxu0 %v343
        %v407 = vpop.f32.mrf.mxu0
        %v408 = vadd.f32 %v321, %v407
        %409 = vmatmul.f32.gmra.mxu0 %v346
        %v410 = vpop.f32.mrf.mxu0
        %v411 = vadd.f32 %v321, %v410
        %412 = vmatmul.f32.gmra.mxu0 %v349
        %v413 = vpop.f32.mrf.mxu0
        %v414 = vadd.f32 %v321, %v413
        %415 = vmatmul.f32.gmra.mxu0 %v352
        %v416 = vpop.f32.mrf.mxu0
        %v417 = vadd.f32 %v321, %v416
        %418 = vmatmul.f32.gmra.mxu0 %v355
        %v419 = vpop.f32.mrf.mxu0
        %v420 = vadd.f32 %v321, %v419
        %421 = vmatmul.f32.gmra.mxu0 %v358
        %v422 = vpop.f32.mrf.mxu0
        %v423 = vadd.f32 %v321, %v422
        %424 = vmatmul.f32.gmra.mxu0 %v361
        %v425 = vpop.f32.mrf.mxu0
        %v426 = vadd.f32 %v321, %v425
        %427 = vmatmul.f32.gmra.mxu0 %v364
        %v428 = vpop.f32.mrf.mxu0
        %v429 = vadd.f32 %v321, %v428
        %430 = vmatmul.f32.gmra.mxu0 %v367
        %v431 = vpop.f32.mrf.mxu0
        %v432 = vadd.f32 %v321, %v431
        %433 = vmatmul.f32.gmra.mxu0 %v370
        %v434 = vpop.f32.mrf.mxu0
        %v435 = vadd.f32 %v321, %v434
        %436 = vdwg.mxu0
        %v437 = vld [vmem:[%s299] sm:$0xff]
        %v438 = vld [vmem:[%s299 + $0x8] sm:$0xff]
        %v439 = vld [vmem:[%s299 + $0x10] sm:$0xff]
        %v440 = vld [vmem:[%s299 + $0x18] sm:$0xff]
        %v441 = vld [vmem:[%s299 + $0x20] sm:$0xff]
        %v442 = vld [vmem:[%s299 + $0x28] sm:$0xff]
        %v443 = vld [vmem:[%s299 + $0x30] sm:$0xff]
        %v444 = vld [vmem:[%s299 + $0x38] sm:$0xff]
        %v445 = vld [vmem:[%s299 + $0x40] sm:$0xff]
        %v446 = vld [vmem:[%s299 + $0x48] sm:$0xff]
        %v447 = vld [vmem:[%s299 + $0x50] sm:$0xff]
        %v448 = vld [vmem:[%s299 + $0x58] sm:$0xff]
        %v449 = vld [vmem:[%s299 + $0x60] sm:$0xff]
        %v450 = vld [vmem:[%s299 + $0x68] sm:$0xff]
        %v451 = vld [vmem:[%s299 + $0x70] sm:$0xff]
        %v452 = vld [vmem:[%s299 + $0x78] sm:$0xff]
        %v453 = vld [vmem:[%s3] sm:$0x3]
        %455 = vset.pattern.permute.xlu0 0
        %456 = vperm.xlu0 %455, %v437
        %v457 = vpop.permute.xlu0 %456
        %460 = vset.pattern.permute.xlu0 0
        %461 = vperm.xlu0 %460, %v438
        %v462 = vpop.permute.xlu0 %461
        %465 = vset.pattern.permute.xlu0 0
        %466 = vperm.xlu0 %465, %v439
        %v467 = vpop.permute.xlu0 %466
        %470 = vset.pattern.permute.xlu0 0
        %471 = vperm.xlu0 %470, %v440
        %v472 = vpop.permute.xlu0 %471
        %475 = vset.pattern.permute.xlu0 0
        %476 = vperm.xlu0 %475, %v441
        %v477 = vpop.permute.xlu0 %476
        %480 = vset.pattern.permute.xlu0 0
        %481 = vperm.xlu0 %480, %v442
        %v482 = vpop.permute.xlu0 %481
        %485 = vset.pattern.permute.xlu0 0
        %486 = vperm.xlu0 %485, %v443
        %v487 = vpop.permute.xlu0 %486
        %490 = vset.pattern.permute.xlu0 0
        %491 = vperm.xlu0 %490, %v444
        %v492 = vpop.permute.xlu0 %491
        %495 = vset.pattern.permute.xlu0 0
        %496 = vperm.xlu0 %495, %v445
        %v497 = vpop.permute.xlu0 %496
        %500 = vset.pattern.permute.xlu0 0
        %501 = vperm.xlu0 %500, %v446
        %v502 = vpop.permute.xlu0 %501
        %505 = vset.pattern.permute.xlu0 0
        %506 = vperm.xlu0 %505, %v447
        %v507 = vpop.permute.xlu0 %506
        %510 = vset.pattern.permute.xlu0 0
        %511 = vperm.xlu0 %510, %v448
        %v512 = vpop.permute.xlu0 %511
        %515 = vset.pattern.permute.xlu0 0
        %516 = vperm.xlu0 %515, %v449
        %v517 = vpop.permute.xlu0 %516
        %520 = vset.pattern.permute.xlu0 0
        %521 = vperm.xlu0 %520, %v450
        %v522 = vpop.permute.xlu0 %521
        %525 = vset.pattern.permute.xlu0 0
        %526 = vperm.xlu0 %525, %v451
        %v527 = vpop.permute.xlu0 %526
        %530 = vset.pattern.permute.xlu0 0
        %531 = vperm.xlu0 %530, %v452
        %v532 = vpop.permute.xlu0 %531
        %v534 = vperm.slane %v453, 0
        %v535 = vmul.f32 %v457, %v534
        %v536 = vmul.f32 %v462, %v534
        %v537 = vmul.f32 %v467, %v534
        %v538 = vmul.f32 %v472, %v534
        %v539 = vmul.f32 %v477, %v534
        %v540 = vmul.f32 %v482, %v534
        %v541 = vmul.f32 %v487, %v534
        %v542 = vmul.f32 %v492, %v534
        %v543 = vmul.f32 %v497, %v534
        %v544 = vmul.f32 %v502, %v534
        %v545 = vmul.f32 %v507, %v534
        %v546 = vmul.f32 %v512, %v534
        %v547 = vmul.f32 %v517, %v534
        %v548 = vmul.f32 %v522, %v534
        %v549 = vmul.f32 %v527, %v534
        %v550 = vmul.f32 %v532, %v534
        %v551 = vadd.f32 %v390, %v535
        %v552 = vadd.f32 %v393, %v536
        %v553 = vadd.f32 %v396, %v537
        %v554 = vadd.f32 %v399, %v538
        %v555 = vadd.f32 %v402, %v539
        %v556 = vadd.f32 %v405, %v540
        %v557 = vadd.f32 %v408, %v541
        %v558 = vadd.f32 %v411, %v542
        %v559 = vadd.f32 %v414, %v543
        %v560 = vadd.f32 %v417, %v544
        %v561 = vadd.f32 %v420, %v545
        %v562 = vadd.f32 %v423, %v546
        %v563 = vadd.f32 %v426, %v547
        %v564 = vadd.f32 %v429, %v548
        %v565 = vadd.f32 %v432, %v549
        %v566 = vadd.f32 %v435, %v550
        %567 = vset.pattern.permute.xlu0 1
        %568 = vperm.xlu0 %567, %v437
        %v569 = vpop.permute.xlu0 %568
        %571 = vset.pattern.permute.xlu0 1
        %572 = vperm.xlu0 %571, %v438
        %v573 = vpop.permute.xlu0 %572
        %575 = vset.pattern.permute.xlu0 1
        %576 = vperm.xlu0 %575, %v439
        %v577 = vpop.permute.xlu0 %576
        %579 = vset.pattern.permute.xlu0 1
        %580 = vperm.xlu0 %579, %v440
        %v581 = vpop.permute.xlu0 %580
        %583 = vset.pattern.permute.xlu0 1
        %584 = vperm.xlu0 %583, %v441
        %v585 = vpop.permute.xlu0 %584
        %587 = vset.pattern.permute.xlu0 1
        %588 = vperm.xlu0 %587, %v442
        %v589 = vpop.permute.xlu0 %588
        %591 = vset.pattern.permute.xlu0 1
        %592 = vperm.xlu0 %591, %v443
        %v593 = vpop.permute.xlu0 %592
        %595 = vset.pattern.permute.xlu0 1
        %596 = vperm.xlu0 %595, %v444
        %v597 = vpop.permute.xlu0 %596
        %599 = vset.pattern.permute.xlu0 1
        %600 = vperm.xlu0 %599, %v445
        %v601 = vpop.permute.xlu0 %600
        %603 = vset.pattern.permute.xlu0 1
        %604 = vperm.xlu0 %603, %v446
        %v605 = vpop.permute.xlu0 %604
        %607 = vset.pattern.permute.xlu0 1
        %608 = vperm.xlu0 %607, %v447
        %v609 = vpop.permute.xlu0 %608
        %611 = vset.pattern.permute.xlu0 1
        %612 = vperm.xlu0 %611, %v448
        %v613 = vpop.permute.xlu0 %612
        %615 = vset.pattern.permute.xlu0 1
        %616 = vperm.xlu0 %615, %v449
        %v617 = vpop.permute.xlu0 %616
        %619 = vset.pattern.permute.xlu0 1
        %620 = vperm.xlu0 %619, %v450
        %v621 = vpop.permute.xlu0 %620
        %623 = vset.pattern.permute.xlu0 1
        %624 = vperm.xlu0 %623, %v451
        %v625 = vpop.permute.xlu0 %624
        %627 = vset.pattern.permute.xlu0 1
        %628 = vperm.xlu0 %627, %v452
        %v629 = vpop.permute.xlu0 %628
        %v631 = vperm.slane %v453, 1
        %v632 = vmul.f32 %v569, %v631
        %v633 = vmul.f32 %v573, %v631
        %v634 = vmul.f32 %v577, %v631
        %v635 = vmul.f32 %v581, %v631
        %v636 = vmul.f32 %v585, %v631
        %v637 = vmul.f32 %v589, %v631
        %v638 = vmul.f32 %v593, %v631
        %v639 = vmul.f32 %v597, %v631
        %v640 = vmul.f32 %v601, %v631
        %v641 = vmul.f32 %v605, %v631
        %v642 = vmul.f32 %v609, %v631
        %v643 = vmul.f32 %v613, %v631
        %v644 = vmul.f32 %v617, %v631
        %v645 = vmul.f32 %v621, %v631
        %v646 = vmul.f32 %v625, %v631
        %v647 = vmul.f32 %v629, %v631
        %v648 = vadd.f32 %v551, %v632
        %v649 = vadd.f32 %v552, %v633
        %v650 = vadd.f32 %v553, %v634
        %v651 = vadd.f32 %v554, %v635
        %v652 = vadd.f32 %v555, %v636
        %v653 = vadd.f32 %v556, %v637
        %v654 = vadd.f32 %v557, %v638
        %v655 = vadd.f32 %v558, %v639
        %v656 = vadd.f32 %v559, %v640
        %v657 = vadd.f32 %v560, %v641
        %v658 = vadd.f32 %v561, %v642
        %v659 = vadd.f32 %v562, %v643
        %v660 = vadd.f32 %v563, %v644
        %v661 = vadd.f32 %v564, %v645
        %v662 = vadd.f32 %v565, %v646
        %v663 = vadd.f32 %v566, %v647
        %v664 = vmax.f32 %v648, 0.0
        %v665 = vmax.f32 %v649, 0.0
        %v666 = vmax.f32 %v650, 0.0
        %v667 = vmax.f32 %v651, 0.0
        %v668 = vmax.f32 %v652, 0.0
        %v669 = vmax.f32 %v653, 0.0
        %v670 = vmax.f32 %v654, 0.0
        %v671 = vmax.f32 %v655, 0.0
        %v672 = vmax.f32 %v656, 0.0
        %v673 = vmax.f32 %v657, 0.0
        %v674 = vmax.f32 %v658, 0.0
        %v675 = vmax.f32 %v659, 0.0
        %v676 = vmax.f32 %v660, 0.0
        %v677 = vmax.f32 %v661, 0.0
        %v678 = vmax.f32 %v662, 0.0
        %v679 = vmax.f32 %v663, 0.0
        %v680 = vld [vmem:[%s5] sm:$0x1]
        %s681 = sld [smem:[#allocation2]]
        %v682 = vstv %s681
        %683 = vmatpush.xpose.msra.mxu0 %v679
        %684 = vmatpush.xpose.msra.mxu0 %v678
        %685 = vmatpush.xpose.msra.mxu0 %v677
        %686 = vmatpush.xpose.msra.mxu0 %v676
        %687 = vmatpush.xpose.msra.mxu0 %v675
        %688 = vmatpush.xpose.msra.mxu0 %v674
        %689 = vmatpush.xpose.msra.mxu0 %v673
        %690 = vmatpush.xpose.msra.mxu0 %v672
        %691 = vmatpush.xpose.msra.mxu0 %v671
        %692 = vmatpush.xpose.msra.mxu0 %v670
        %693 = vmatpush.xpose.msra.mxu0 %v669
        %694 = vmatpush.xpose.msra.mxu0 %v668
        %695 = vmatpush.xpose.msra.mxu0 %v667
        %696 = vmatpush.xpose.msra.mxu0 %v666
        %697 = vmatpush.xpose.msra.mxu0 %v665
        %698 = vmatpush.xpose.msra.mxu0 %v664
        %699 = vmatmul.f32.gmra.mxu0 %v680
        %v700 = vpop.f32.mrf.mxu0
        %v701 = vadd.f32 %v682, %v700
        %702 = vdwg.mxu0
        %v703 = vxor.u32 %v701, 2147483648
        %v704 = vmul.f32 %v703, 1.442695
        %v705 = vpow.pop %v704
        %v706 = vadd.f32 %v705, 1.0
        %v707 = vrcp.pop %v706
        %v708 = vmul.f32 %v706, %v707
        %v709 = vsub.f32 1.0, %v708
        %v710 = vmul.f32 %v707, %v709
        %v711 = vadd.f32 %v707, %v710
        %vm712 = vweird.f32 %v706
        %vm713 = vweird.f32 %v707
        %vm714 = vmor %vm712, %vm713
        %v715 = vsel %vm714, %v707, %v711
        %v716 = vand.u32 2147483647, %v706
        %vm717 = vcmp.eq.f32.partialorder %v716, 8.507059e+37
        %v718 = vand.u32 %v706, 2147483648
        %v719 = vor.u32 1.1754944e-38, %v718
        %v720 = vsel %vm717, %v719, %v715
        %v721 = vmul.f32 1.0, %v720
        %722 = vst [vmem:[%s288] sm:$0x1] %v721
        %s723 = sand.u32 %s187, 1
        %s724 = scalar_lea.sflag [#allocation4], %s723
        %s725 = sand.u32 %s187, 1
        %s726 = scalar_lea.vmem [#allocation3], %s725
        // Predicated region
        $region49: #{parameterized_classifier_forward.1} parent=47 // pred_check
          %p727 = pneg %p197
        $region50: #{parameterized_classifier_forward.1} parent=47 // pred_check_branch
          %729 = sbr.rel (%p727) target = $region52
        $region51: #{parameterized_classifier_forward.1} parent=47 // pred_region
          %731 = vsyncadd %s724, 0
          %s732 = scalar_lea.hbm %s7, %s22
          %s734 = sshll.u32 %s726, 4
          %s735 = int_to_ptr.vmem [resolvable:$true] %s734
          %s736 = sshll.u32 %s732, 4
          %s737 = int_to_ptr.hbm [resolvable:$true] %s736
          %739 = dma.vmem_to_hbm [thread:$0]  %s735, 16, %s737, %s724
        $region52: #{parameterized_classifier_forward.1} parent=47 // pred_fallthru
          _
      $region48: #{parameterized_classifier_forward.1} parent=5 // pred_fallthru
        _
      %p740 = scmp.le.s32.totalorder 2, %s17
      // Predicated region
      $region53: #{parameterized_classifier_forward.1} parent=5 // pred_check
        %p741 = pneg %p740
      $region54: #{parameterized_classifier_forward.1} parent=5 // pred_check_branch
        %743 = sbr.rel (%p741) target = $region56
      $region55: #{parameterized_classifier_forward.1} parent=5 // pred_region
        %s744 = ssub.s32 %s17, 2
        // Predicated region
        $region57: #{parameterized_classifier_forward.1} parent=55 // pred_check
          %p745 = pneg %p203
        $region58: #{parameterized_classifier_forward.1} parent=55 // pred_check_branch
          %747 = sbr.rel (%p745) target = $region60
        $region59: #{parameterized_classifier_forward.1} parent=55 // pred_region
          %s748 = sand.u32 %s188, 1
          %s749 = scalar_lea.sflag [#allocation4], %s748
          %s750 = sand.u32 %s188, 1
          %s751 = scalar_lea.vmem [#allocation3], %s750
          %753 = dma.done %s749, 16
        $region60: #{parameterized_classifier_forward.1} parent=55 // pred_fallthru
          _
      $region56: #{parameterized_classifier_forward.1} parent=5 // pred_fallthru
        _
    $region6: #{parameterized_classifier_forward.1} parent=1 // loop_footer
      %s21 = sadd.s32 1, %s17
    $region7: #{parameterized_classifier_forward.1} parent=1 // loop_footer_branch
      %16 = sbr.rel target = $region3
    $region8: #{parameterized_classifier_forward.1} parent=1 // loop_exit
      _
    %754 = vsyncpa [#allocation4], 1
    %s755 = scalar_lea.sflag [#allocation4], 1
    %756 = vsyncpa %s755, 1

</llo_original>
